<compile_context>
chip_gen: v7x
topology: tpu7x:2x2x1
jax: 0.10.0
libtpu: 0.0.40
codegen_flags: <defaults>
</compile_context>

<pallas_src>
import jax
import jax.numpy as jnp
from jax.experimental import pallas as pl
from jax.experimental.pallas import tpu as pltpu


def _round_up(x, m):
    return ((x + m - 1) // m) * m


def _vmem_bytes(tb, fi, tk, lp, bpe, obe):
    """Double-buffered pipeline footprint + f32 accumulator scratch."""
    dbuf = 2 * (tb * fi * bpe        # x tile
                + fi * tk * bpe      # W1 column slab
                + tk * 4             # b1 slice (f32)
                + tk * lp * bpe      # W2 row slab
                + lp * 4             # b2 (f32)
                + tb * lp * obe)     # output tile
    return dbuf + tb * lp * 4        # acc scratch


def _head_kernel(x_ref, w1_ref, b1_ref, w2_ref, b2_ref, o_ref, acc_ref):
    # x_ref  : [TB, Fi]   combined (CLS ++ Atchley) activations (compute dtype)
    # w1_ref : [Fi, TK]   dense-weight column slab for this k step
    # b1_ref : [1, TK]    matching dense-bias slice (f32)
    # w2_ref : [TK, Lp]   out_proj row slab for this k step
    # b2_ref : [1, Lp]    out_proj bias (f32)
    # o_ref  : [TB, Lp]   output tile (resident across the k axis)
    # acc_ref: [TB, Lp]   f32 VMEM accumulator scratch
    k = pl.program_id(1)

    @pl.when(k == 0)
    def _init():
        acc_ref[...] = jnp.broadcast_to(
            b2_ref[...].astype(jnp.float32), acc_ref.shape)

    # h_k = tanh(x @ W1[:, k-tile] + b1[k-tile]); f32 MXU accumulation,
    # tanh stays in f32 on the EUP (free slot; avoids v5e's missing bf16 EUP).
    h = jnp.dot(x_ref[...], w1_ref[...],
                preferred_element_type=jnp.float32) + b1_ref[...]
    h = jnp.tanh(h)

    # Partial second matmul for this K slab.
    acc_ref[...] += jnp.dot(h.astype(w2_ref.dtype), w2_ref[...],
                            preferred_element_type=jnp.float32)

    @pl.when(k == pl.num_programs(1) - 1)
    def _finalize():
        o_ref[...] = acc_ref[...].astype(o_ref.dtype)


def esm_classification_head(esm_features, atchley_features,
                            dense_w, dense_b, out_w, out_b,
                            *, compute_dtype=jnp.bfloat16):
    """Forward pass matching the PyTorch EsmClassificationHead (eval mode).

    esm_features     : [B, S, H]
    atchley_features : [B, 2*H]
    dense_w          : [F, F]  (already [in, out]),  F = 3*H
    dense_b          : [F]
    out_w            : [F, L]  (already [in, out])
    out_b            : [L]
    returns          : [B, L]
    """
    B, _, H = esm_features.shape
    F = 3 * H
    L = out_w.shape[1]
    out_dtype = esm_features.dtype

    # ---- JAX-side glue: CLS token + concat, done once outside the kernel ----
    x_cls = esm_features[:, 0, :]                                   # [B, H]
    combined = jnp.concatenate([x_cls, atchley_features], axis=1)   # [B, F]

    bpe = jnp.dtype(compute_dtype).itemsize
    obe = jnp.dtype(out_dtype).itemsize

    # ---- Generation-aware VMEM budget --------------------------------------
    try:
        vmem_cap = int(pltpu.get_tpu_info().vmem_capacity_bytes)
    except Exception:
        vmem_cap = 64 * 1024 * 1024          # conservative: v7x per-TC VMEM
    budget = int(0.75 * vmem_cap)            # ~96 MiB v5e/v6e, ~48 MiB v7x

    # ---- Hardware-friendly padding / tiling ---------------------------------
    Fi_pad = _round_up(F, 128)               # x cols / W1 rows  (lane-dense)
    Lp = _round_up(L, 128)                   # lane-dense output (no vst.msk)

    # Batch tiling (first pass; 16-row rounding for bf16 sublane packing).
    sub = 16 if bpe == 2 else 8
    if B <= 128:
        TB = _round_up(B, sub)
    else:
        TB = 128

    # K tile along the intermediate dim (W1 output cols == W2 input rows).
    tk_max = 1024 if budget >= 72 * 1024 * 1024 else 512
    if F <= tk_max:
        TK = _round_up(F, 128)
    else:
        TK = tk_max
        while TK > 128 and _vmem_bytes(TB, Fi_pad, TK, Lp, bpe, obe) > budget:
            TK //= 2
    Fm_pad = _round_up(F, TK)                # intermediate dim, padded to TK

    # Larger batch tiles for big batches (fewer W1 re-streams), within budget.
    if B > 128:
        TB = min(512, _round_up(B, 128))
        while TB > 128 and _vmem_bytes(TB, Fi_pad, TK, Lp, bpe, obe) > budget:
            TB = max(128, _round_up(TB // 2, 128))
    B_pad = _round_up(B, TB)

    # ---- Zero-padded operands (padding contributes exactly 0 to outputs) ----
    combined = jnp.pad(
        combined, ((0, B_pad - B), (0, Fi_pad - F))).astype(compute_dtype)
    w1 = jnp.pad(
        dense_w, ((0, Fi_pad - F), (0, Fm_pad - F))).astype(compute_dtype)
    b1 = jnp.pad(dense_b, (0, Fm_pad - F)).reshape(1, Fm_pad).astype(jnp.float32)
    w2 = jnp.pad(out_w, ((0, Fm_pad - F), (0, Lp - L))).astype(compute_dtype)
    b2 = jnp.pad(out_b, (0, Lp - L)).reshape(1, Lp).astype(jnp.float32)

    n_b = B_pad // TB
    n_k = Fm_pad // TK

    # ---- VMEM limit (estimate already includes double-buffering) ------------
    vmem_est = _vmem_bytes(TB, Fi_pad, TK, Lp, bpe, obe)
    vmem_limit = int(min(max(int(vmem_est * 1.25), 32 * 1024 * 1024), budget))

    cost = pl.CostEstimate(
        flops=2 * B_pad * Fm_pad * (Fi_pad + Lp),
        transcendentals=B_pad * Fm_pad,
        bytes_accessed=(n_b * (Fi_pad * Fm_pad + Fm_pad * Lp) * bpe   # W1+W2/tile
                        + B_pad * Fi_pad * bpe                         # x
                        + n_b * (Fm_pad + Lp) * 4                      # biases
                        + B_pad * Lp * obe),                           # output
    )

    out_padded = pl.pallas_call(
        _head_kernel,
        out_shape=jax.ShapeDtypeStruct((B_pad, Lp), out_dtype),
        grid_spec=pltpu.PrefetchScalarGridSpec(
            num_scalar_prefetch=0,
            grid=(n_b, n_k),
            in_specs=[
                pl.BlockSpec((TB, Fi_pad), lambda b, k: (b, 0)),   # activations
                pl.BlockSpec((Fi_pad, TK), lambda b, k: (0, k)),   # W1 col slab
                pl.BlockSpec((1, TK), lambda b, k: (0, k)),        # b1 slice
                pl.BlockSpec((TK, Lp), lambda b, k: (k, 0)),       # W2 row slab
                pl.BlockSpec((1, Lp), lambda b, k: (0, 0)),        # b2
            ],
            out_specs=pl.BlockSpec((TB, Lp), lambda b, k: (b, 0)),
            scratch_shapes=[pltpu.VMEM((TB, Lp), jnp.float32)],
        ),
        compiler_params=pltpu.CompilerParams(
            dimension_semantics=("parallel", "arbitrary"),
            vmem_limit_bytes=vmem_limit,
        ),
        cost_estimate=cost,
    )(combined, w1, b1, w2, b2)

    return out_padded[:B, :L]


if __name__ == "__main__":
    # Small synthetic config: hidden_size=32, num_labels=4, seq=8, batch=2.
    B, S, H, L = 2, 8, 32, 4
    F = 3 * H

    key = jax.random.PRNGKey(0)
    k_esm, k_atch, k_w1, k_b1, k_w2, k_b2 = jax.random.split(key, 6)

    esm_features = jax.random.normal(k_esm, (B, S, H), dtype=jnp.float32)
    atchley_features = jax.random.normal(k_atch, (B, 2 * H), dtype=jnp.float32)

    # Linear weights stored pre-transposed to [in, out].
    dense_w = jax.random.normal(k_w1, (F, F), dtype=jnp.float32) * 0.02
    dense_b = jax.random.normal(k_b1, (F,), dtype=jnp.float32) * 0.02
    out_w = jax.random.normal(k_w2, (F, L), dtype=jnp.float32) * 0.02
    out_b = jax.random.normal(k_b2, (L,), dtype=jnp.float32) * 0.02

    result = esm_classification_head(esm_features, atchley_features,
                                     dense_w, dense_b, out_w, out_b)
    jax.block_until_ready(result)
    assert result.shape == (B, L)

    # Reference with the same bf16 weight streaming / f32 accumulation.
    x = esm_features[:, 0, :]
    combined = jnp.concatenate([x, atchley_features], axis=1)
    h_ref = jnp.tanh(jnp.dot(combined.astype(jnp.bfloat16),
                             dense_w.astype(jnp.bfloat16),
                             preferred_element_type=jnp.float32) + dense_b)
    ref_bf16 = jnp.dot(h_ref.astype(jnp.bfloat16), out_w.astype(jnp.bfloat16),
                       preferred_element_type=jnp.float32) + out_b
    assert jnp.allclose(result, ref_bf16, atol=1e-3, rtol=1e-3), float(
        jnp.max(jnp.abs(result - ref_bf16)))

    # Loose sanity check against the full-f32 PyTorch-equivalent math
    # (bf16 weight streaming changes numerics at the ~1e-2 relative level).
    ref_f32 = jnp.tanh(combined @ dense_w + dense_b) @ out_w + out_b
    assert jnp.allclose(result, ref_f32, atol=5e-2, rtol=5e-2)

    print("KERNEL_OK")
</pallas_src>

<mosaic_0001>
module attributes {stable_mosaic.version = 11 : i64} {
  func.func @_head_kernel(%arg0: i32, %arg1: i32, %arg2: memref<16x128xbf16, #tpu.memory_space<vmem>>, %arg3: memref<128x128xbf16, #tpu.memory_space<vmem>>, %arg4: memref<1x128xf32, #tpu.memory_space<vmem>>, %arg5: memref<128x128xbf16, #tpu.memory_space<vmem>>, %arg6: memref<1x128xf32, #tpu.memory_space<vmem>>, %arg7: memref<16x128xf32, #tpu.memory_space<vmem>>, %arg8: memref<16x128xf32, #tpu.memory_space<vmem>>) attributes {dimension_semantics = [#tpu.dimension_semantics<parallel>, #tpu.dimension_semantics<arbitrary>], iteration_bounds = array<i64: 1, 1>, scalar_prefetch = 0 : i64, scratch_operands = 1 : i64, tpu.core_type = #tpu.core_type<tc>, window_params = [{transform_indices = @transform_0, window_bounds = array<i64: 16, 128>}, {transform_indices = @transform_1, window_bounds = array<i64: 128, 128>}, {transform_indices = @transform_2, window_bounds = array<i64: 1, 128>}, {transform_indices = @transform_3, window_bounds = array<i64: 128, 128>}, {pipeline_mode = #tpu.pipeline_mode<synchronous>, transform_indices = @transform_4, window_bounds = array<i64: 1, 128>}, {transform_indices = @transform_5, window_bounds = array<i64: 16, 128>}]} {
    %c0_i32 = arith.constant 0 : i32
    %0 = arith.cmpi eq, %arg1, %c0_i32 : i32
    %1 = arith.extui %0 : i1 to i32
    %c0_i32_0 = arith.constant 0 : i32
    %2 = arith.cmpi ne, %1, %c0_i32_0 : i32
    scf.if %2 {
      %c0_15 = arith.constant 0 : index
      %c0_16 = arith.constant 0 : index
      %19 = vector.load %arg6[%c0_15, %c0_16] : memref<1x128xf32, #tpu.memory_space<vmem>>, vector<1x128xf32>
      %20 = vector.shape_cast %19 : vector<1x128xf32> to vector<1x128xf32>
      %21 = vector.broadcast %20 : vector<1x128xf32> to vector<16x128xf32>
      %c0_17 = arith.constant 0 : index
      %c0_18 = arith.constant 0 : index
      %22 = vector.load %arg8[%c0_17, %c0_18] : memref<16x128xf32, #tpu.memory_space<vmem>>, vector<16x128xf32>
      tpu.vector_store %arg8[%c0_17, %c0_18], %21 {strides = array<i32>} : memref<16x128xf32, #tpu.memory_space<vmem>>, vector<16x128xf32>,
    } else {
    }
    %c0 = arith.constant 0 : index
    %c0_1 = arith.constant 0 : index
    %3 = vector.load %arg2[%c0, %c0_1] : memref<16x128xbf16, #tpu.memory_space<vmem>>, vector<16x128xbf16>
    %c0_2 = arith.constant 0 : index
    %c0_3 = arith.constant 0 : index
    %4 = vector.load %arg3[%c0_2, %c0_3] : memref<128x128xbf16, #tpu.memory_space<vmem>>, vector<128x128xbf16>
    %cst = arith.constant dense<0.000000e+00> : vector<16x128xf32>
    %5 = tpu.matmul %3, %4, %cst {dimension_numbers = #tpu.dot_dimension_numbers<[1], [0], [0], [1], [0, 0, 1, 1], [], []>} : vector<16x128xbf16>, vector<128x128xbf16>, vector<16x128xf32> -> vector<16x128xf32>
    %c0_4 = arith.constant 0 : index
    %c0_5 = arith.constant 0 : index
    %6 = vector.load %arg4[%c0_4, %c0_5] : memref<1x128xf32, #tpu.memory_space<vmem>>, vector<1x128xf32>
    %7 = vector.broadcast %6 : vector<1x128xf32> to vector<16x128xf32>
    %8 = arith.addf %5, %7 : vector<16x128xf32>
    %9 = math.tanh %8 : vector<16x128xf32>
    %c0_6 = arith.constant 0 : index
    %c0_7 = arith.constant 0 : index
    %10 = vector.load %arg8[%c0_6, %c0_7] : memref<16x128xf32, #tpu.memory_space<vmem>>, vector<16x128xf32>
    %11 = arith.truncf %9 : vector<16x128xf32> to vector<16x128xbf16>
    %c0_8 = arith.constant 0 : index
    %c0_9 = arith.constant 0 : index
    %12 = vector.load %arg5[%c0_8, %c0_9] : memref<128x128xbf16, #tpu.memory_space<vmem>>, vector<128x128xbf16>
    %cst_10 = arith.constant dense<0.000000e+00> : vector<16x128xf32>
    %13 = tpu.matmul %11, %12, %cst_10 {dimension_numbers = #tpu.dot_dimension_numbers<[1], [0], [0], [1], [0, 0, 1, 1], [], []>} : vector<16x128xbf16>, vector<128x128xbf16>, vector<16x128xf32> -> vector<16x128xf32>
    %14 = arith.addf %10, %13 : vector<16x128xf32>
    %c0_11 = arith.constant 0 : index
    %c0_12 = arith.constant 0 : index
    %15 = vector.load %arg8[%c0_11, %c0_12] : memref<16x128xf32, #tpu.memory_space<vmem>>, vector<16x128xf32>
    tpu.vector_store %arg8[%c0_11, %c0_12], %14 {strides = array<i32>} : memref<16x128xf32, #tpu.memory_space<vmem>>, vector<16x128xf32>,
    %c0_i32_13 = arith.constant 0 : i32
    %16 = arith.cmpi eq, %arg1, %c0_i32_13 : i32
    %17 = arith.extui %16 : i1 to i32
    %c0_i32_14 = arith.constant 0 : i32
    %18 = arith.cmpi ne, %17, %c0_i32_14 : i32
    scf.if %18 {
      %c0_15 = arith.constant 0 : index
      %c0_16 = arith.constant 0 : index
      %19 = vector.load %arg8[%c0_15, %c0_16] : memref<16x128xf32, #tpu.memory_space<vmem>>, vector<16x128xf32>
      %c0_17 = arith.constant 0 : index
      %c0_18 = arith.constant 0 : index
      %20 = vector.load %arg7[%c0_17, %c0_18] : memref<16x128xf32, #tpu.memory_space<vmem>>, vector<16x128xf32>
      tpu.vector_store %arg7[%c0_17, %c0_18], %19 {strides = array<i32>} : memref<16x128xf32, #tpu.memory_space<vmem>>, vector<16x128xf32>,
    } else {
    }
    return
  }
  func.func @transform_0(%arg0: i32, %arg1: i32) -> (i32, i32) {
    %c0_i32 = arith.constant 0 : i32
    %c0_i32_0 = arith.constant 0 : i32
    return %arg0, %c0_i32 : i32, i32
  }
  func.func @transform_1(%arg0: i32, %arg1: i32) -> (i32, i32) {
    %c0_i32 = arith.constant 0 : i32
    %c0_i32_0 = arith.constant 0 : i32
    return %c0_i32, %arg1 : i32, i32
  }
  func.func @transform_2(%arg0: i32, %arg1: i32) -> (i32, i32) {
    %c0_i32 = arith.constant 0 : i32
    %c0_i32_0 = arith.constant 0 : i32
    return %c0_i32, %arg1 : i32, i32
  }
  func.func @transform_3(%arg0: i32, %arg1: i32) -> (i32, i32) {
    %c0_i32 = arith.constant 0 : i32
    %c0_i32_0 = arith.constant 0 : i32
    return %arg1, %c0_i32 : i32, i32
  }
  func.func @transform_4(%arg0: i32, %arg1: i32) -> (i32, i32) {
    %c0_i32 = arith.constant 0 : i32
    %c0_i32_0 = arith.constant 0 : i32
    %c0_i32_1 = arith.constant 0 : i32
    return %c0_i32, %c0_i32_0 : i32, i32
  }
  func.func @transform_5(%arg0: i32, %arg1: i32) -> (i32, i32) {
    %c0_i32 = arith.constant 0 : i32
    %c0_i32_0 = arith.constant 0 : i32
    return %arg0, %c0_i32 : i32, i32
  }
}

</mosaic_0001>

<llo_original>
// kernel: tpu_custom_call.1
$region0: #{tpu_custom_call.1}
  #allocation0 [shape = 'u32[]', space=smem, size = 0x4, offset = 0x4, fixed_abs, tag = 'smem constant byte address 0x4 - core index']
  #allocation1 [shape = 'u32[144,128]{1,0:T(1,128)}', space=vmem, size = 0x12000, scoped, tag = 'internal scratch']
  #allocation2 [shape = 'f32[16,128]{1,0:T(8,128)}', space=vmem, size = 0x2000, scoped, tag = 'scratch operand']
  %s0 = inlined_call_operand.hbm [shape: bf16[16,128], index: 0, kind: input, shape index: {}]
  %s1 = inlined_call_operand.hbm [shape: bf16[128,128], index: 1, kind: input, shape index: {}]
  %s2 = inlined_call_operand.vmem [shape: f32[1,128], index: 2, kind: input, shape index: {}]
  %s3 = inlined_call_operand.hbm [shape: bf16[128,128], index: 3, kind: input, shape index: {}]
  %s4 = inlined_call_operand.vmem [shape: f32[1,128], index: 4, kind: input, shape index: {}]
  %s5 = inlined_call_operand.hbm [shape: f32[16,128], index: 5, kind: output, shape index: {}]
  %s6 = sld [smem:[#allocation0]]
  $region50: #{tpu_custom_call.1} parent=0
    _
  %s8 = ssub.s32 1, %s6
  %s9 = scalar_select 0, %s8, %s6
  $region1: #{tpu_custom_call.1} parent=0
    #allocation3 [shape = 'u8[4096]{0}', space=vmem, size = 0x1000, scoped, tag = 'input window, operand 0, single buffered']
    #allocation4 [shape = 's32[1]{0}', space=sflag, size = 0x4, scoped, tag = 'scoped memory for tpu_custom_call.1']
    #allocation5 [shape = 's32[1]{0}', space=sflag, size = 0x4, scoped, tag = 'scoped memory for tpu_custom_call.1']
    #allocation6 [shape = 'u8[32768]{0}', space=vmem, size = 0x8000, scoped, tag = 'input window, operand 1, single buffered']
    #allocation7 [shape = 's32[1]{0}', space=sflag, size = 0x4, scoped, tag = 'scoped memory for tpu_custom_call.1']
    #allocation8 [shape = 'u8[32768]{0}', space=vmem, size = 0x8000, scoped, tag = 'input window, operand 3, single buffered']
    #allocation9 [shape = 'u8[8192]{0}', space=vmem, size = 0x2000, scoped, tag = 'output window, operand 0, single buffered']
    %10 = vsyncpa [#allocation4], 0
    %11 = vsyncpa [#allocation7], 0
    %12 = vsyncpa [#allocation5], 0
    // Predicated region
    $region2: #{tpu_custom_call.1} parent=1 // pred_check
      _
    $region3: #{tpu_custom_call.1} parent=1 // pred_check_branch
      %14 = sbr.rel (0) target = $region5
    $region4: #{tpu_custom_call.1} parent=1 // pred_region
      %s16 = ssub.s32 128, 128
      %17 = vsyncadd [#allocation4], %s16
      %s18 = sshll.u32 [#allocation3], 4
      %s19 = int_to_ptr.vmem [resolvable:$true] %s18
      %24 = dma.hbm_to_vmem [thread:$0]  %s0, 128, %s19, [#allocation4], 64, 64, 4
    $region5: #{tpu_custom_call.1} parent=1 // pred_fallthru
      _
    // Predicated region
    $region6: #{tpu_custom_call.1} parent=1 // pred_check
      _
    $region7: #{tpu_custom_call.1} parent=1 // pred_check_branch
      %26 = sbr.rel (0) target = $region9
    $region8: #{tpu_custom_call.1} parent=1 // pred_region
      %s28 = ssub.s32 1024, 1024
      %29 = vsyncadd [#allocation7], %s28
      %s30 = sshll.u32 [#allocation6], 4
      %s31 = int_to_ptr.vmem [resolvable:$true] %s30
      %36 = dma.hbm_to_vmem [thread:$0]  %s1, 1024, %s31, [#allocation7], 64, 64, 4
    $region9: #{tpu_custom_call.1} parent=1 // pred_fallthru
      _
    // Predicated region
    $region10: #{tpu_custom_call.1} parent=1 // pred_check
      _
    $region11: #{tpu_custom_call.1} parent=1 // pred_check_branch
      %38 = sbr.rel (0) target = $region13
    $region12: #{tpu_custom_call.1} parent=1 // pred_region
      _
    $region13: #{tpu_custom_call.1} parent=1 // pred_fallthru
      _
    // Predicated region
    $region14: #{tpu_custom_call.1} parent=1 // pred_check
      _
    $region15: #{tpu_custom_call.1} parent=1 // pred_check_branch
      %40 = sbr.rel (0) target = $region17
    $region16: #{tpu_custom_call.1} parent=1 // pred_region
      %s42 = ssub.s32 1024, 1024
      %43 = vsyncadd [#allocation7], %s42
      %s44 = sshll.u32 [#allocation8], 4
      %s45 = int_to_ptr.vmem [resolvable:$true] %s44
      %50 = dma.hbm_to_vmem [thread:$0]  %s3, 1024, %s45, [#allocation7], 64, 64, 4
    $region17: #{tpu_custom_call.1} parent=1 // pred_fallthru
      _
    // Predicated region
    $region18: #{tpu_custom_call.1} parent=1 // pred_check
      _
    $region19: #{tpu_custom_call.1} parent=1 // pred_check_branch
      %52 = sbr.rel (0) target = $region21
    $region20: #{tpu_custom_call.1} parent=1 // pred_region
      _
    $region21: #{tpu_custom_call.1} parent=1 // pred_fallthru
      _
    // Predicated region
    $region22: #{tpu_custom_call.1} parent=1 // pred_check
      _
    $region23: #{tpu_custom_call.1} parent=1 // pred_check_branch
      %54 = sbr.rel (0) target = $region25
    $region24: #{tpu_custom_call.1} parent=1 // pred_region
      %55 = dma.done [#allocation4], 128
    $region25: #{tpu_custom_call.1} parent=1 // pred_fallthru
      _
    // Predicated region
    $region26: #{tpu_custom_call.1} parent=1 // pred_check
      _
    $region27: #{tpu_custom_call.1} parent=1 // pred_check_branch
      %57 = sbr.rel (0) target = $region29
    $region28: #{tpu_custom_call.1} parent=1 // pred_region
      %58 = dma.done [#allocation7], 1024
    $region29: #{tpu_custom_call.1} parent=1 // pred_fallthru
      _
    // Predicated region
    $region30: #{tpu_custom_call.1} parent=1 // pred_check
      _
    $region31: #{tpu_custom_call.1} parent=1 // pred_check_branch
      %60 = sbr.rel (0) target = $region33
    $region32: #{tpu_custom_call.1} parent=1 // pred_region
      %61 = dma.done [#allocation7], 1024
    $region33: #{tpu_custom_call.1} parent=1 // pred_fallthru
      _
    %p63 = scmp.eq.s32.totalorder 0, 0
    // Predicated region
    $region34: #{tpu_custom_call.1} parent=1 // pred_check
      %p64 = pneg %p63
    $region35: #{tpu_custom_call.1} parent=1 // pred_check_branch
      %66 = sbr.rel (%p64) target = $region37
    $region36: #{tpu_custom_call.1} parent=1 // pred_region
      %v67 = vld [vmem:[%s4] sm:$0x1]
      %v69 = vlaneseq
      %v70 = vshrl.u32 %v69, 7
      %v71 = vsub.s32 0, %v70
      %v72 = vrot.slane %v67, %v71
      %74 = vst [vmem:[#allocation2] sm:$0xff] %v72
      %75 = vst [vmem:[#allocation2 + $0x8] sm:$0xff] %v72
    $region37: #{tpu_custom_call.1} parent=1 // pred_fallthru
      _
    %v76 = vld [vmem:[#allocation3] sm:$0xf]
    %v77 = vld [vmem:[#allocation3 + $0x4] sm:$0xf]
    %v78 = vld [vmem:[#allocation6] sm:$0xf]
    %v79 = vld [vmem:[#allocation6 + $0x4] sm:$0xf]
    %v80 = vld [vmem:[#allocation6 + $0x8] sm:$0xf]
    %v81 = vld [vmem:[#allocation6 + $0xc] sm:$0xf]
    %v82 = vld [vmem:[#allocation6 + $0x10] sm:$0xf]
    %v83 = vld [vmem:[#allocation6 + $0x14] sm:$0xf]
    %v84 = vld [vmem:[#allocation6 + $0x18] sm:$0xf]
    %v85 = vld [vmem:[#allocation6 + $0x1c] sm:$0xf]
    %v86 = vld [vmem:[#allocation6 + $0x20] sm:$0xf]
    %v87 = vld [vmem:[#allocation6 + $0x24] sm:$0xf]
    %v88 = vld [vmem:[#allocation6 + $0x28] sm:$0xf]
    %v89 = vld [vmem:[#allocation6 + $0x2c] sm:$0xf]
    %v90 = vld [vmem:[#allocation6 + $0x30] sm:$0xf]
    %v91 = vld [vmem:[#allocation6 + $0x34] sm:$0xf]
    %v92 = vld [vmem:[#allocation6 + $0x38] sm:$0xf]
    %v93 = vld [vmem:[#allocation6 + $0x3c] sm:$0xf]
    %v94 = vld [vmem:[%s2] sm:$0x1]
    %v96 = vlaneseq
    %v97 = vshrl.u32 %v96, 7
    %v98 = vsub.s32 0, %v97
    %v99 = vrot.slane %v94, %v98
    %v103 = vunpack.c.l.b16 %v76
    %v104 = vunpack.c.l.b16 %v77
    %v105 = vpack.c.b16 %v104, %v103
    %v123 = vunpack.c.l.b16 %v78
    %v124 = vunpack.c.l.b16 %v79
    %v125 = vunpack.c.l.b16 %v80
    %v126 = vunpack.c.l.b16 %v81
    %v127 = vunpack.c.l.b16 %v82
    %v128 = vunpack.c.l.b16 %v83
    %v129 = vunpack.c.l.b16 %v84
    %v130 = vunpack.c.l.b16 %v85
    %v131 = vunpack.c.l.b16 %v86
    %v132 = vunpack.c.l.b16 %v87
    %v133 = vunpack.c.l.b16 %v88
    %v134 = vunpack.c.l.b16 %v89
    %v135 = vunpack.c.l.b16 %v90
    %v136 = vunpack.c.l.b16 %v91
    %v137 = vunpack.c.l.b16 %v92
    %v138 = vunpack.c.l.b16 %v93
    %v139 = vpack.c.b16 %v124, %v123
    %v140 = vpack.c.b16 %v126, %v125
    %v141 = vpack.c.b16 %v128, %v127
    %v142 = vpack.c.b16 %v130, %v129
    %v143 = vpack.c.b16 %v132, %v131
    %v144 = vpack.c.b16 %v134, %v133
    %v145 = vpack.c.b16 %v136, %v135
    %v146 = vpack.c.b16 %v138, %v137
    %155 = vmatprep.subr.bf16.mxu0 0
    %156 = vmatpush1.bf16.msra.mxu0 %v139
    %157 = vmatprep.subr.bf16.mxu0 0
    %158 = vmatpush1.bf16.msra.mxu0 %v140
    %159 = vmatprep.subr.bf16.mxu0 0
    %160 = vmatpush1.bf16.msra.mxu0 %v141
    %161 = vmatprep.subr.bf16.mxu0 0
    %162 = vmatpush1.bf16.msra.mxu0 %v142
    %163 = vmatprep.subr.bf16.mxu0 0
    %164 = vmatpush1.bf16.msra.mxu0 %v143
    %165 = vmatprep.subr.bf16.mxu0 0
    %166 = vmatpush1.bf16.msra.mxu0 %v144
    %167 = vmatprep.subr.bf16.mxu0 0
    %168 = vmatpush1.bf16.msra.mxu0 %v145
    %169 = vmatprep.subr.bf16.mxu0 0
    %170 = vmatpush1.bf16.msra.mxu0 %v146
    %171 = vmatprep.subr.bf16.mxu0 0
    %172 = vmatpush1.bf16.msra.mxu0 0
    %173 = vmatprep.subr.bf16.mxu0 0
    %174 = vmatpush1.bf16.msra.mxu0 0
    %175 = vmatprep.subr.bf16.mxu0 0
    %176 = vmatpush1.bf16.msra.mxu0 0
    %177 = vmatprep.subr.bf16.mxu0 0
    %178 = vmatpush1.bf16.msra.mxu0 0
    %179 = vmatprep.subr.bf16.mxu0 0
    %180 = vmatpush1.bf16.msra.mxu0 0
    %181 = vmatprep.subr.bf16.mxu0 0
    %182 = vmatpush1.bf16.msra.mxu0 0
    %183 = vmatprep.subr.bf16.mxu0 0
    %184 = vmatpush1.bf16.msra.mxu0 0
    %185 = vmatprep.subr.bf16.mxu0 0
    %186 = vmatpush1.bf16.msra.mxu0 0
    %187 = vmatprep.mubr.bf16.mxu0 0
    %188 = vmatmul.mubr.bf16.gmra.mrb[0].mxu0 %v105
    %v189 = vpop.f32.mrb[0].mxu0
    %v190 = vadd.f32 %v99, %v189
    %v191 = vpop.f32.mrb[0].mxu0
    %v192 = vpop.f32.mrb[0].mxu0
    %v193 = vadd.f32 %v99, %v192
    %v194 = vpop.f32.mrb[0].mxu0
    %195 = vdwg.mxu0
    %v196 = vtanh.pop %v190
    %v197 = vtanh.pop %v193
    %v198 = vld [vmem:[#allocation2] sm:$0xff]
    %v199 = vld [vmem:[#allocation2 + $0x8] sm:$0xff]
    %v200 = vpack.c.bf16 %v197, %v196
    %v201 = vld [vmem:[#allocation8] sm:$0xf]
    %v202 = vld [vmem:[#allocation8 + $0x4] sm:$0xf]
    %v203 = vld [vmem:[#allocation8 + $0x8] sm:$0xf]
    %v204 = vld [vmem:[#allocation8 + $0xc] sm:$0xf]
    %v205 = vld [vmem:[#allocation8 + $0x10] sm:$0xf]
    %v206 = vld [vmem:[#allocation8 + $0x14] sm:$0xf]
    %v207 = vld [vmem:[#allocation8 + $0x18] sm:$0xf]
    %v208 = vld [vmem:[#allocation8 + $0x1c] sm:$0xf]
    %v209 = vld [vmem:[#allocation8 + $0x20] sm:$0xf]
    %v210 = vld [vmem:[#allocation8 + $0x24] sm:$0xf]
    %v211 = vld [vmem:[#allocation8 + $0x28] sm:$0xf]
    %v212 = vld [vmem:[#allocation8 + $0x2c] sm:$0xf]
    %v213 = vld [vmem:[#allocation8 + $0x30] sm:$0xf]
    %v214 = vld [vmem:[#allocation8 + $0x34] sm:$0xf]
    %v215 = vld [vmem:[#allocation8 + $0x38] sm:$0xf]
    %v216 = vld [vmem:[#allocation8 + $0x3c] sm:$0xf]
    %v233 = vunpack.c.l.b16 %v201
    %v234 = vunpack.c.l.b16 %v202
    %v235 = vunpack.c.l.b16 %v203
    %v236 = vunpack.c.l.b16 %v204
    %v237 = vunpack.c.l.b16 %v205
    %v238 = vunpack.c.l.b16 %v206
    %v239 = vunpack.c.l.b16 %v207
    %v240 = vunpack.c.l.b16 %v208
    %v241 = vunpack.c.l.b16 %v209
    %v242 = vunpack.c.l.b16 %v210
    %v243 = vunpack.c.l.b16 %v211
    %v244 = vunpack.c.l.b16 %v212
    %v245 = vunpack.c.l.b16 %v213
    %v246 = vunpack.c.l.b16 %v214
    %v247 = vunpack.c.l.b16 %v215
    %v248 = vunpack.c.l.b16 %v216
    %v249 = vpack.c.b16 %v234, %v233
    %v250 = vpack.c.b16 %v236, %v235
    %v251 = vpack.c.b16 %v238, %v237
    %v252 = vpack.c.b16 %v240, %v239
    %v253 = vpack.c.b16 %v242, %v241
    %v254 = vpack.c.b16 %v244, %v243
    %v255 = vpack.c.b16 %v246, %v245
    %v256 = vpack.c.b16 %v248, %v247
    %265 = vmatprep.subr.bf16.mxu0 0
    %266 = vmatpush1.bf16.msra.mxu0 %v249
    %267 = vmatprep.subr.bf16.mxu0 0
    %268 = vmatpush1.bf16.msra.mxu0 %v250
    %269 = vmatprep.subr.bf16.mxu0 0
    %270 = vmatpush1.bf16.msra.mxu0 %v251
    %271 = vmatprep.subr.bf16.mxu0 0
    %272 = vmatpush1.bf16.msra.mxu0 %v252
    %273 = vmatprep.subr.bf16.mxu0 0
    %274 = vmatpush1.bf16.msra.mxu0 %v253
    %275 = vmatprep.subr.bf16.mxu0 0
    %276 = vmatpush1.bf16.msra.mxu0 %v254
    %277 = vmatprep.subr.bf16.mxu0 0
    %278 = vmatpush1.bf16.msra.mxu0 %v255
    %279 = vmatprep.subr.bf16.mxu0 0
    %280 = vmatpush1.bf16.msra.mxu0 %v256
    %281 = vmatprep.subr.bf16.mxu0 0
    %282 = vmatpush1.bf16.msra.mxu0 0
    %283 = vmatprep.subr.bf16.mxu0 0
    %284 = vmatpush1.bf16.msra.mxu0 0
    %285 = vmatprep.subr.bf16.mxu0 0
    %286 = vmatpush1.bf16.msra.mxu0 0
    %287 = vmatprep.subr.bf16.mxu0 0
    %288 = vmatpush1.bf16.msra.mxu0 0
    %289 = vmatprep.subr.bf16.mxu0 0
    %290 = vmatpush1.bf16.msra.mxu0 0
    %291 = vmatprep.subr.bf16.mxu0 0
    %292 = vmatpush1.bf16.msra.mxu0 0
    %293 = vmatprep.subr.bf16.mxu0 0
    %294 = vmatpush1.bf16.msra.mxu0 0
    %295 = vmatprep.subr.bf16.mxu0 0
    %296 = vmatpush1.bf16.msra.mxu0 0
    %297 = vmatprep.mubr.bf16.mxu0 0
    %298 = vmatmul.mubr.bf16.gmra.mrb[0].mxu0 %v200
    %v299 = vpop.f32.mrb[0].mxu0
    %v300 = vadd.f32 0.0, %v299
    %v301 = vpop.f32.mrb[0].mxu0
    %v302 = vpop.f32.mrb[0].mxu0
    %v303 = vadd.f32 0.0, %v302
    %v304 = vpop.f32.mrb[0].mxu0
    %305 = vdwg.mxu0
    %v306 = vadd.f32 %v198, %v300
    %v307 = vadd.f32 %v199, %v303
    %308 = vst [vmem:[#allocation2] sm:$0xff] %v306
    %309 = vst [vmem:[#allocation2 + $0x8] sm:$0xff] %v307
    // Predicated region
    $region38: #{tpu_custom_call.1} parent=1 // pred_check
      %p310 = pneg %p63
    $region39: #{tpu_custom_call.1} parent=1 // pred_check_branch
      %312 = sbr.rel (%p310) target = $region41
    $region40: #{tpu_custom_call.1} parent=1 // pred_region
      %v313 = vld [vmem:[#allocation2] sm:$0xff]
      %v314 = vld [vmem:[#allocation2 + $0x8] sm:$0xff]
      %315 = vst [vmem:[#allocation9] sm:$0xff] %v313
      %316 = vst [vmem:[#allocation9 + $0x8] sm:$0xff] %v314
    $region41: #{tpu_custom_call.1} parent=1 // pred_fallthru
      _
    // Predicated region
    $region42: #{tpu_custom_call.1} parent=1 // pred_check
      _
    $region43: #{tpu_custom_call.1} parent=1 // pred_check_branch
      %318 = sbr.rel (0) target = $region45
    $region44: #{tpu_custom_call.1} parent=1 // pred_region
      %s320 = ssub.s32 256, 256
      %321 = vsyncadd [#allocation5], %s320
      %s322 = sshll.u32 [#allocation9], 4
      %s323 = int_to_ptr.vmem [resolvable:$true] %s322
      %328 = dma.vmem_to_hbm [thread:$0]  %s323, 256, %s5, [#allocation5], 128, 128, 8
    $region45: #{tpu_custom_call.1} parent=1 // pred_fallthru
      _
    // Predicated region
    $region46: #{tpu_custom_call.1} parent=1 // pred_check
      _
    $region47: #{tpu_custom_call.1} parent=1 // pred_check_branch
      %330 = sbr.rel (0) target = $region49
    $region48: #{tpu_custom_call.1} parent=1 // pred_region
      %331 = dma.done [#allocation5], 256
    $region49: #{tpu_custom_call.1} parent=1 // pred_fallthru
      _
    %332 = vsyncpa [#allocation4], 1
    %333 = vsyncpa [#allocation7], 1
    %334 = vsyncpa [#allocation5], 1

</llo_original>
